<compile_context>
chip_gen: v7x
topology: tpu7x:2x2x1
jax: 0.10.0
libtpu: 0.0.40
codegen_flags: <defaults>
</compile_context>

<pallas_src>
import functools

import jax
import jax.numpy as jnp
from jax.experimental import pallas as pl
from jax.experimental.pallas import tpu as pltpu

EPS = 1e-5  # nn.BatchNorm1d default eps


# ------------------------- one-time parameter prep ------------------------- #

def prepare_params(gamma, beta, w):
    """One-time prep: (1,D) f32 gamma/beta, (D, C_pad) bf16 transposed weight.

    The class axis is zero-padded to a multiple of 128 so the in-kernel score
    store and the weight DMA are lane-dense (unmasked).
    """
    c, d = w.shape
    c_pad = ((c + 127) // 128) * 128
    wt = jnp.zeros((d, c_pad), dtype=jnp.bfloat16)
    wt = wt.at[:, :c].set(jnp.transpose(w).astype(jnp.bfloat16))
    gamma2 = gamma.reshape(1, d).astype(jnp.float32)
    beta2 = beta.reshape(1, d).astype(jnp.float32)
    return gamma2, beta2, wt


# ------------------------------ Pallas kernels ------------------------------ #

def _bn_fused_kernel(x_ref, gamma_ref, beta_ref, wt_ref, feat_ref, score_ref):
    """Single-block path: whole batch resident in VMEM."""
    x = x_ref[...].astype(jnp.float32)                              # (N, D)

    mean = jnp.mean(x, axis=0, keepdims=True)                       # (1, D)
    var = jnp.mean(jnp.square(x - mean), axis=0, keepdims=True)     # (1, D)

    # Fold affine: 2 VPU ops per element on the big slab.
    a = gamma_ref[...] * jax.lax.rsqrt(var + EPS)                   # (1, D)
    b = beta_ref[...] - mean * a                                    # (1, D)
    feat = x * a + b                                                # (N, D)

    feat_ref[...] = feat.astype(feat_ref.dtype)
    score_ref[...] = jnp.dot(feat.astype(jnp.bfloat16), wt_ref[...],
                             preferred_element_type=jnp.float32
                             ).astype(score_ref.dtype)              # (N, Cp)


def _bn_stats_kernel(x_ref, xsum_ref, xsq_ref, *, n_total, block_n):
    """Pass 1 (tiled): accumulate per-channel sum and sum-of-squares."""
    i = pl.program_id(0)

    @pl.when(i == 0)
    def _():
        xsum_ref[...] = jnp.zeros_like(xsum_ref)
        xsq_ref[...] = jnp.zeros_like(xsq_ref)

    x = x_ref[...].astype(jnp.float32)                              # (Tn, D)
    # Mask rows past the end of the batch (partial last tile).
    row = jax.lax.broadcasted_iota(jnp.int32, x.shape, 0)
    valid = (i * block_n + row) < n_total
    x = jnp.where(valid, x, 0.0)

    xsum_ref[...] += jnp.sum(x, axis=0, keepdims=True)
    xsq_ref[...] += jnp.sum(x * x, axis=0, keepdims=True)


def _bn_norm_matmul_kernel(x_ref, xsum_ref, xsq_ref, gamma_ref, beta_ref,
                           wt_ref, feat_ref, score_ref, *, n_total):
    """Pass 2 (tiled): normalize a batch tile and run the classifier matmul."""
    inv_n = 1.0 / float(n_total)
    mean = xsum_ref[...] * inv_n                                    # (1, D)
    var = xsq_ref[...] * inv_n - mean * mean                        # (1, D)

    a = gamma_ref[...] * jax.lax.rsqrt(var + EPS)                   # (1, D)
    b = beta_ref[...] - mean * a                                    # (1, D)

    x = x_ref[...].astype(jnp.float32)                              # (Tn, D)
    feat = x * a + b

    feat_ref[...] = feat.astype(feat_ref.dtype)
    score_ref[...] = jnp.dot(feat.astype(jnp.bfloat16), wt_ref[...],
                             preferred_element_type=jnp.float32
                             ).astype(score_ref.dtype)              # (Tn, Cp)


# ----------------------------- pallas_call paths ---------------------------- #

def _forward_fused(x, gamma2, beta2, wt):
    n, d = x.shape
    c_pad = wt.shape[1]
    vmem = pl.BlockSpec(memory_space=pltpu.MemorySpace.VMEM)
    return pl.pallas_call(
        _bn_fused_kernel,
        out_shape=(jax.ShapeDtypeStruct((n, d), x.dtype),
                   jax.ShapeDtypeStruct((n, c_pad), x.dtype)),
        in_specs=[vmem, vmem, vmem, vmem],
        out_specs=(pl.BlockSpec(memory_space=pltpu.MemorySpace.VMEM),
                   pl.BlockSpec(memory_space=pltpu.MemorySpace.VMEM)),
    )(x, gamma2, beta2, wt)


def _forward_tiled(x, gamma2, beta2, wt, block_n):
    n, d = x.shape
    c_pad = wt.shape[1]
    nb = pl.cdiv(n, block_n)

    # Pass 1: per-channel sum / sumsq over batch tiles (resident accumulators).
    xsum, xsq = pl.pallas_call(
        functools.partial(_bn_stats_kernel, n_total=n, block_n=block_n),
        out_shape=(jax.ShapeDtypeStruct((1, d), jnp.float32),
                   jax.ShapeDtypeStruct((1, d), jnp.float32)),
        grid=(nb,),
        in_specs=[pl.BlockSpec((block_n, d), lambda i: (i, 0))],
        out_specs=(pl.BlockSpec((1, d), lambda i: (0, 0)),
                   pl.BlockSpec((1, d), lambda i: (0, 0))),
        compiler_params=pltpu.CompilerParams(
            dimension_semantics=("arbitrary",)),
    )(x)

    # Pass 2: normalize + classify, batch axis parallel (megacore on v7x),
    # classifier weight resident in VMEM across iterations.
    feat, score_p = pl.pallas_call(
        functools.partial(_bn_norm_matmul_kernel, n_total=n),
        out_shape=(jax.ShapeDtypeStruct((n, d), x.dtype),
                   jax.ShapeDtypeStruct((n, c_pad), x.dtype)),
        grid=(nb,),
        in_specs=[
            pl.BlockSpec((block_n, d), lambda i: (i, 0)),   # x tile
            pl.BlockSpec((1, d), lambda i: (0, 0)),         # xsum
            pl.BlockSpec((1, d), lambda i: (0, 0)),         # xsq
            pl.BlockSpec((1, d), lambda i: (0, 0)),         # gamma
            pl.BlockSpec((1, d), lambda i: (0, 0)),         # beta
            pl.BlockSpec((d, c_pad), lambda i: (0, 0)),     # wt (resident)
        ],
        out_specs=(pl.BlockSpec((block_n, d), lambda i: (i, 0)),
                   pl.BlockSpec((block_n, c_pad), lambda i: (i, 0))),
        compiler_params=pltpu.CompilerParams(
            dimension_semantics=("parallel",)),
    )(x, xsum, xsq, gamma2, beta2, wt)
    return feat, score_p


@functools.partial(jax.jit, static_argnames=("class_num", "block_n"))
def bn_classifier_forward(x, gamma2, beta2, wt, *, class_num, block_n=1024):
    """x: (N, in_dim) f32; prepped params from prepare_params().

    Returns (feature (N, in_dim), cls_score (N, class_num)) like the module.
    """
    n = x.shape[0]
    if n <= block_n:
        feat, score_p = _forward_fused(x, gamma2, beta2, wt)
    else:
        feat, score_p = _forward_tiled(x, gamma2, beta2, wt, block_n)
    return feat, score_p[:, :class_num]


# ---------------------------- pure-JAX reference ---------------------------- #

def bn_classifier_ref(x, gamma, beta, w):
    mean = jnp.mean(x, axis=0, keepdims=True)
    var = jnp.mean(jnp.square(x - mean), axis=0, keepdims=True)
    feat = (x - mean) * jax.lax.rsqrt(var + EPS) * gamma.reshape(1, -1) \
           + beta.reshape(1, -1)
    score = feat @ w.T
    return feat, score


# ----------------------------------- main ----------------------------------- #

if __name__ == "__main__":
    N, IN_DIM, CLASS_NUM = 8, 128, 32

    key = jax.random.PRNGKey(0)
    kx, kg, kb, kw, kx2 = jax.random.split(key, 5)

    x = jax.random.normal(kx, (N, IN_DIM), jnp.float32)
    # Module init is gamma=1, beta=0 (beta frozen), W ~ N(0, 0.001).  Use
    # slightly perturbed gamma/beta so the affine path is actually exercised.
    gamma = 1.0 + 0.1 * jax.random.normal(kg, (IN_DIM,), jnp.float32)
    beta = 0.1 * jax.random.normal(kb, (IN_DIM,), jnp.float32)
    w = 0.001 * jax.random.normal(kw, (CLASS_NUM, IN_DIM), jnp.float32)

    # One-time parameter prep (transpose + bf16 + lane-padding), outside jit.
    gamma2, beta2, wt = prepare_params(gamma, beta, w)

    # --- small demo shape: single-block fused path ---
    feat, score = jax.block_until_ready(
        bn_classifier_forward(x, gamma2, beta2, wt, class_num=CLASS_NUM))
    assert feat.shape == (N, IN_DIM), feat.shape
    assert score.shape == (N, CLASS_NUM), score.shape

    feat_ref, score_ref = bn_classifier_ref(x, gamma, beta, w)
    err_feat = float(jnp.max(jnp.abs(feat - feat_ref)))
    err_score = float(jnp.max(jnp.abs(score - score_ref)))
    assert err_feat < 1e-4, f"feature mismatch (fused): {err_feat}"
    assert err_score < 1e-3, f"cls_score mismatch (fused): {err_score}"

    # --- larger batch: tiled two-pass path (incl. a partial last tile) ---
    N2 = 300
    x2 = jax.random.normal(kx2, (N2, IN_DIM), jnp.float32)
    feat2, score2 = jax.block_until_ready(
        bn_classifier_forward(x2, gamma2, beta2, wt,
                              class_num=CLASS_NUM, block_n=128))
    assert feat2.shape == (N2, IN_DIM), feat2.shape
    assert score2.shape == (N2, CLASS_NUM), score2.shape

    feat2_ref, score2_ref = bn_classifier_ref(x2, gamma, beta, w)
    err_feat2 = float(jnp.max(jnp.abs(feat2 - feat2_ref)))
    err_score2 = float(jnp.max(jnp.abs(score2 - score2_ref)))
    assert err_feat2 < 1e-4, f"feature mismatch (tiled): {err_feat2}"
    assert err_score2 < 1e-3, f"cls_score mismatch (tiled): {err_score2}"

    print("KERNEL_OK")
</pallas_src>

<mosaic_0001>
module attributes {stable_mosaic.version = 11 : i64} {
  func.func @_bn_fused_kernel(%arg0: memref<8x128xf32, #tpu.memory_space<vmem>>, %arg1: memref<1x128xf32, #tpu.memory_space<vmem>>, %arg2: memref<1x128xf32, #tpu.memory_space<vmem>>, %arg3: memref<128x128xbf16, #tpu.memory_space<vmem>>, %arg4: memref<8x128xf32, #tpu.memory_space<vmem>>, %arg5: memref<8x128xf32, #tpu.memory_space<vmem>>) attributes {dimension_semantics = [], scalar_prefetch = 0 : i64, scratch_operands = 0 : i64, tpu.core_type = #tpu.core_type<tc>} {
    %c0 = arith.constant 0 : index
    %c0_0 = arith.constant 0 : index
    %0 = vector.load %arg0[%c0, %c0_0] : memref<8x128xf32, #tpu.memory_space<vmem>>, vector<8x128xf32>
    %cst = arith.constant dense<0.000000e+00> : vector<128xf32>
    %1 = vector.multi_reduction <add>, %0, %cst [0] : vector<8x128xf32> to vector<128xf32>
    %2 = vector.shape_cast %1 : vector<128xf32> to vector<1x128xf32>
    %cst_1 = arith.constant 8.000000e+00 : f32
    %3 = vector.broadcast %cst_1 : f32 to vector<1x128xf32>
    %4 = arith.divf %2, %3 : vector<1x128xf32>
    %5 = vector.broadcast %4 : vector<1x128xf32> to vector<8x128xf32>
    %6 = arith.subf %0, %5 : vector<8x128xf32>
    %7 = arith.mulf %6, %6 : vector<8x128xf32>
    %cst_2 = arith.constant dense<0.000000e+00> : vector<128xf32>
    %8 = vector.multi_reduction <add>, %7, %cst_2 [0] : vector<8x128xf32> to vector<128xf32>
    %9 = vector.shape_cast %8 : vector<128xf32> to vector<1x128xf32>
    %cst_3 = arith.constant 8.000000e+00 : f32
    %10 = vector.broadcast %cst_3 : f32 to vector<1x128xf32>
    %11 = arith.divf %9, %10 : vector<1x128xf32>
    %c0_4 = arith.constant 0 : index
    %c0_5 = arith.constant 0 : index
    %12 = vector.load %arg1[%c0_4, %c0_5] : memref<1x128xf32, #tpu.memory_space<vmem>>, vector<1x128xf32>
    %cst_6 = arith.constant 9.99999974E-6 : f32
    %13 = vector.broadcast %cst_6 : f32 to vector<1x128xf32>
    %14 = arith.addf %11, %13 : vector<1x128xf32>
    %15 = math.rsqrt %14 : vector<1x128xf32>
    %16 = arith.mulf %12, %15 : vector<1x128xf32>
    %c0_7 = arith.constant 0 : index
    %c0_8 = arith.constant 0 : index
    %17 = vector.load %arg2[%c0_7, %c0_8] : memref<1x128xf32, #tpu.memory_space<vmem>>, vector<1x128xf32>
    %18 = arith.mulf %4, %16 : vector<1x128xf32>
    %19 = arith.subf %17, %18 : vector<1x128xf32>
    %20 = vector.broadcast %16 : vector<1x128xf32> to vector<8x128xf32>
    %21 = arith.mulf %0, %20 : vector<8x128xf32>
    %22 = vector.broadcast %19 : vector<1x128xf32> to vector<8x128xf32>
    %23 = arith.addf %21, %22 : vector<8x128xf32>
    %c0_9 = arith.constant 0 : index
    %c0_10 = arith.constant 0 : index
    %24 = vector.load %arg4[%c0_9, %c0_10] : memref<8x128xf32, #tpu.memory_space<vmem>>, vector<8x128xf32>
    tpu.vector_store %arg4[%c0_9, %c0_10], %23 {strides = array<i32>} : memref<8x128xf32, #tpu.memory_space<vmem>>, vector<8x128xf32>,
    %25 = arith.truncf %23 : vector<8x128xf32> to vector<8x128xbf16>
    %c0_11 = arith.constant 0 : index
    %c0_12 = arith.constant 0 : index
    %26 = vector.load %arg3[%c0_11, %c0_12] : memref<128x128xbf16, #tpu.memory_space<vmem>>, vector<128x128xbf16>
    %cst_13 = arith.constant dense<0.000000e+00> : vector<8x128xf32>
    %27 = tpu.matmul %25, %26, %cst_13 {dimension_numbers = #tpu.dot_dimension_numbers<[1], [0], [0], [1], [0, 0, 1, 1], [], []>} : vector<8x128xbf16>, vector<128x128xbf16>, vector<8x128xf32> -> vector<8x128xf32>
    %c0_14 = arith.constant 0 : index
    %c0_15 = arith.constant 0 : index
    %28 = vector.load %arg5[%c0_14, %c0_15] : memref<8x128xf32, #tpu.memory_space<vmem>>, vector<8x128xf32>
    tpu.vector_store %arg5[%c0_14, %c0_15], %27 {strides = array<i32>} : memref<8x128xf32, #tpu.memory_space<vmem>>, vector<8x128xf32>,
    return
  }
}

</mosaic_0001>

<llo_original>
// kernel: bn_classifier_forward.1
$region0: #{bn_classifier_forward.1}
  #allocation0 [shape = 'u32[]', space=smem, size = 0x4, offset = 0x4, fixed_abs, tag = 'smem constant byte address 0x4 - core index']
  #allocation1 [shape = 'u32[144,128]{1,0:T(1,128)}', space=vmem, size = 0x12000, scoped, tag = 'internal scratch']
  %s0 = inlined_call_operand.hbm [shape: f32[8,128], index: 0, kind: input, shape index: {}]
  %s1 = inlined_call_operand.vmem [shape: f32[1,128], index: 1, kind: input, shape index: {}]
  %s2 = inlined_call_operand.vmem [shape: f32[1,128], index: 2, kind: input, shape index: {}]
  %s3 = inlined_call_operand.hbm [shape: bf16[128,128], index: 3, kind: input, shape index: {}]
  %s4 = inlined_call_operand.hbm [shape: f32[8,128], index: 4, kind: output, shape index: {0}]
  %s5 = inlined_call_operand.hbm [shape: f32[8,128], index: 5, kind: output, shape index: {1}]
  %6 = xla_tuple %s4, %s5
  %s7 = sld [smem:[#allocation0]]
  $region42: #{bn_classifier_forward.1} parent=0
    _
  %s9 = ssub.s32 1, %s7
  %s10 = scalar_select 0, %s9, %s7
  $region1: #{bn_classifier_forward.1} parent=0
    #allocation2 [shape = 'u8[4096]{0}', space=vmem, size = 0x1000, scoped, tag = 'input window, operand 0, single buffered']
    #allocation3 [shape = 's32[1]{0}', space=sflag, size = 0x4, scoped, tag = 'scoped memory for bn_classifier_forward.1']
    #allocation4 [shape = 's32[1]{0}', space=sflag, size = 0x4, scoped, tag = 'scoped memory for bn_classifier_forward.1']
    #allocation5 [shape = 'u8[32768]{0}', space=vmem, size = 0x8000, scoped, tag = 'input window, operand 3, single buffered']
    #allocation6 [shape = 's32[1]{0}', space=sflag, size = 0x4, scoped, tag = 'scoped memory for bn_classifier_forward.1']
    #allocation7 [shape = 'u8[4096]{0}', space=vmem, size = 0x1000, scoped, tag = 'output window, operand 0, single buffered']
    #allocation8 [shape = 'u8[4096]{0}', space=vmem, size = 0x1000, scoped, tag = 'output window, operand 1, single buffered']
    #allocation9 [shape = 's32[1]{0}', space=sflag, size = 0x4, scoped, tag = 'scoped memory for bn_classifier_forward.1']
    %11 = vsyncpa [#allocation3], 0
    %12 = vsyncpa [#allocation6], 0
    %13 = vsyncpa [#allocation4], 0
    %14 = vsyncpa [#allocation9], 0
    // Predicated region
    $region2: #{bn_classifier_forward.1} parent=1 // pred_check
      _
    $region3: #{bn_classifier_forward.1} parent=1 // pred_check_branch
      %16 = sbr.rel (0) target = $region5
    $region4: #{bn_classifier_forward.1} parent=1 // pred_region
      %s18 = ssub.s32 128, 128
      %19 = vsyncadd [#allocation3], %s18
      %s21 = sshll.u32 [#allocation2], 4
      %s22 = int_to_ptr.vmem [resolvable:$true] %s21
      %24 = dma.hbm_to_vmem [thread:$0]  %s0, 128, %s22, [#allocation3]
    $region5: #{bn_classifier_forward.1} parent=1 // pred_fallthru
      _
    // Predicated region
    $region6: #{bn_classifier_forward.1} parent=1 // pred_check
      _
    $region7: #{bn_classifier_forward.1} parent=1 // pred_check_branch
      %26 = sbr.rel (0) target = $region9
    $region8: #{bn_classifier_forward.1} parent=1 // pred_region
      _
    $region9: #{bn_classifier_forward.1} parent=1 // pred_fallthru
      _
    // Predicated region
    $region10: #{bn_classifier_forward.1} parent=1 // pred_check
      _
    $region11: #{bn_classifier_forward.1} parent=1 // pred_check_branch
      %28 = sbr.rel (0) target = $region13
    $region12: #{bn_classifier_forward.1} parent=1 // pred_region
      _
    $region13: #{bn_classifier_forward.1} parent=1 // pred_fallthru
      _
    // Predicated region
    $region14: #{bn_classifier_forward.1} parent=1 // pred_check
      _
    $region15: #{bn_classifier_forward.1} parent=1 // pred_check_branch
      %30 = sbr.rel (0) target = $region17
    $region16: #{bn_classifier_forward.1} parent=1 // pred_region
      %s32 = ssub.s32 1024, 1024
      %33 = vsyncadd [#allocation6], %s32
      %s34 = sshll.u32 [#allocation5], 4
      %s35 = int_to_ptr.vmem [resolvable:$true] %s34
      %40 = dma.hbm_to_vmem [thread:$0]  %s3, 1024, %s35, [#allocation6], 64, 64, 4
    $region17: #{bn_classifier_forward.1} parent=1 // pred_fallthru
      _
    // Predicated region
    $region18: #{bn_classifier_forward.1} parent=1 // pred_check
      _
    $region19: #{bn_classifier_forward.1} parent=1 // pred_check_branch
      %42 = sbr.rel (0) target = $region21
    $region20: #{bn_classifier_forward.1} parent=1 // pred_region
      %43 = dma.done [#allocation3], 128
    $region21: #{bn_classifier_forward.1} parent=1 // pred_fallthru
      _
    // Predicated region
    $region22: #{bn_classifier_forward.1} parent=1 // pred_check
      _
    $region23: #{bn_classifier_forward.1} parent=1 // pred_check_branch
      %45 = sbr.rel (0) target = $region25
    $region24: #{bn_classifier_forward.1} parent=1 // pred_region
      %46 = dma.done [#allocation6], 1024
    $region25: #{bn_classifier_forward.1} parent=1 // pred_fallthru
      _
    %v48 = vld [vmem:[#allocation2] sm:$0xff]
    %v49 = vrot.slane %v48, 4
    %v50 = vadd.f32 %v48, %v49
    %v51 = vrot.slane %v50, 2
    %v52 = vadd.f32 %v50, %v51
    %v53 = vrot.slane %v52, 1
    %v54 = vadd.f32 %v52, %v53
    %v55 = vrcp.pop 8.0
    %v56 = vmul.f32 %v54, %v55
    %v57 = vsub.f32 %v48, %v56
    %v58 = vmul.f32 %v57, %v57
    %v59 = vrot.slane %v58, 4
    %v60 = vadd.f32 %v58, %v59
    %v61 = vrot.slane %v60, 2
    %v62 = vadd.f32 %v60, %v61
    %v63 = vrot.slane %v62, 1
    %v64 = vadd.f32 %v62, %v63
    %v65 = vmul.f32 %v64, %v55
    %v66 = vld [vmem:[%s1] sm:$0x1]
    %v67 = vadd.f32 %v65, 1e-05
    %v68 = vrsqrt.pop %v67
    %v69 = vmul.f32 %v66, %v68
    %v70 = vld [vmem:[%s2] sm:$0x1]
    %v71 = vmul.f32 %v56, %v69
    %v72 = vsub.f32 %v70, %v71
    %v74 = vlaneseq
    %v75 = vshrl.u32 %v74, 7
    %v76 = vsub.s32 0, %v75
    %v77 = vrot.slane %v69, %v76
    %v79 = vmul.f32 %v48, %v77
    %v81 = vlaneseq
    %v82 = vshrl.u32 %v81, 7
    %v83 = vsub.s32 0, %v82
    %v84 = vrot.slane %v72, %v83
    %v86 = vadd.f32 %v79, %v84
    %87 = vst [vmem:[#allocation7] sm:$0xff] %v86
    %v88 = vpack.c.bf16 %v86, %v86
    %v89 = vld [vmem:[#allocation5] sm:$0xf]
    %v90 = vld [vmem:[#allocation5 + $0x4] sm:$0xf]
    %v91 = vld [vmem:[#allocation5 + $0x8] sm:$0xf]
    %v92 = vld [vmem:[#allocation5 + $0xc] sm:$0xf]
    %v93 = vld [vmem:[#allocation5 + $0x10] sm:$0xf]
    %v94 = vld [vmem:[#allocation5 + $0x14] sm:$0xf]
    %v95 = vld [vmem:[#allocation5 + $0x18] sm:$0xf]
    %v96 = vld [vmem:[#allocation5 + $0x1c] sm:$0xf]
    %v97 = vld [vmem:[#allocation5 + $0x20] sm:$0xf]
    %v98 = vld [vmem:[#allocation5 + $0x24] sm:$0xf]
    %v99 = vld [vmem:[#allocation5 + $0x28] sm:$0xf]
    %v100 = vld [vmem:[#allocation5 + $0x2c] sm:$0xf]
    %v101 = vld [vmem:[#allocation5 + $0x30] sm:$0xf]
    %v102 = vld [vmem:[#allocation5 + $0x34] sm:$0xf]
    %v103 = vld [vmem:[#allocation5 + $0x38] sm:$0xf]
    %v104 = vld [vmem:[#allocation5 + $0x3c] sm:$0xf]
    %v121 = vunpack.c.l.b16 %v89
    %v122 = vunpack.c.l.b16 %v90
    %v123 = vunpack.c.l.b16 %v91
    %v124 = vunpack.c.l.b16 %v92
    %v125 = vunpack.c.l.b16 %v93
    %v126 = vunpack.c.l.b16 %v94
    %v127 = vunpack.c.l.b16 %v95
    %v128 = vunpack.c.l.b16 %v96
    %v129 = vunpack.c.l.b16 %v97
    %v130 = vunpack.c.l.b16 %v98
    %v131 = vunpack.c.l.b16 %v99
    %v132 = vunpack.c.l.b16 %v100
    %v133 = vunpack.c.l.b16 %v101
    %v134 = vunpack.c.l.b16 %v102
    %v135 = vunpack.c.l.b16 %v103
    %v136 = vunpack.c.l.b16 %v104
    %v137 = vpack.c.b16 %v122, %v121
    %v138 = vpack.c.b16 %v124, %v123
    %v139 = vpack.c.b16 %v126, %v125
    %v140 = vpack.c.b16 %v128, %v127
    %v141 = vpack.c.b16 %v130, %v129
    %v142 = vpack.c.b16 %v132, %v131
    %v143 = vpack.c.b16 %v134, %v133
    %v144 = vpack.c.b16 %v136, %v135
    %153 = vmatprep.subr.bf16.mxu0 0
    %154 = vmatpush1.bf16.msra.mxu0 %v137
    %155 = vmatprep.subr.bf16.mxu0 0
    %156 = vmatpush1.bf16.msra.mxu0 %v138
    %157 = vmatprep.subr.bf16.mxu0 0
    %158 = vmatpush1.bf16.msra.mxu0 %v139
    %159 = vmatprep.subr.bf16.mxu0 0
    %160 = vmatpush1.bf16.msra.mxu0 %v140
    %161 = vmatprep.subr.bf16.mxu0 0
    %162 = vmatpush1.bf16.msra.mxu0 %v141
    %163 = vmatprep.subr.bf16.mxu0 0
    %164 = vmatpush1.bf16.msra.mxu0 %v142
    %165 = vmatprep.subr.bf16.mxu0 0
    %166 = vmatpush1.bf16.msra.mxu0 %v143
    %167 = vmatprep.subr.bf16.mxu0 0
    %168 = vmatpush1.bf16.msra.mxu0 %v144
    %169 = vmatprep.subr.bf16.mxu0 0
    %170 = vmatpush1.bf16.msra.mxu0 0
    %171 = vmatprep.subr.bf16.mxu0 0
    %172 = vmatpush1.bf16.msra.mxu0 0
    %173 = vmatprep.subr.bf16.mxu0 0
    %174 = vmatpush1.bf16.msra.mxu0 0
    %175 = vmatprep.subr.bf16.mxu0 0
    %176 = vmatpush1.bf16.msra.mxu0 0
    %177 = vmatprep.subr.bf16.mxu0 0
    %178 = vmatpush1.bf16.msra.mxu0 0
    %179 = vmatprep.subr.bf16.mxu0 0
    %180 = vmatpush1.bf16.msra.mxu0 0
    %181 = vmatprep.subr.bf16.mxu0 0
    %182 = vmatpush1.bf16.msra.mxu0 0
    %183 = vmatprep.subr.bf16.mxu0 0
    %184 = vmatpush1.bf16.msra.mxu0 0
    %185 = vmatprep.mubr.bf16.mxu0 0
    %186 = vmatmul.mubr.bf16.gmra.mrb[0].mxu0 %v88
    %v187 = vpop.f32.mrb[0].mxu0
    %v188 = vadd.f32 0.0, %v187
    %v189 = vpop.f32.mrb[0].mxu0
    %v190 = vpop.f32.mrb[0].mxu0
    %v191 = vpop.f32.mrb[0].mxu0
    %192 = vdwg.mxu0
    %193 = vst [vmem:[#allocation8] sm:$0xff] %v188
    // Predicated region
    $region26: #{bn_classifier_forward.1} parent=1 // pred_check
      _
    $region27: #{bn_classifier_forward.1} parent=1 // pred_check_branch
      %195 = sbr.rel (0) target = $region29
    $region28: #{bn_classifier_forward.1} parent=1 // pred_region
      %s197 = ssub.s32 128, 128
      %198 = vsyncadd [#allocation4], %s197
      %s200 = sshll.u32 [#allocation7], 4
      %s201 = int_to_ptr.vmem [resolvable:$true] %s200
      %203 = dma.vmem_to_hbm [thread:$0]  %s201, 128, %s4, [#allocation4]
    $region29: #{bn_classifier_forward.1} parent=1 // pred_fallthru
      _
    // Predicated region
    $region30: #{bn_classifier_forward.1} parent=1 // pred_check
      _
    $region31: #{bn_classifier_forward.1} parent=1 // pred_check_branch
      %205 = sbr.rel (0) target = $region33
    $region32: #{bn_classifier_forward.1} parent=1 // pred_region
      %s207 = ssub.s32 128, 128
      %208 = vsyncadd [#allocation9], %s207
      %s210 = sshll.u32 [#allocation8], 4
      %s211 = int_to_ptr.vmem [resolvable:$true] %s210
      %213 = dma.vmem_to_hbm [thread:$0]  %s211, 128, %s5, [#allocation9]
    $region33: #{bn_classifier_forward.1} parent=1 // pred_fallthru
      _
    // Predicated region
    $region34: #{bn_classifier_forward.1} parent=1 // pred_check
      _
    $region35: #{bn_classifier_forward.1} parent=1 // pred_check_branch
      %215 = sbr.rel (0) target = $region37
    $region36: #{bn_classifier_forward.1} parent=1 // pred_region
      %216 = dma.done [#allocation4], 128
    $region37: #{bn_classifier_forward.1} parent=1 // pred_fallthru
      _
    // Predicated region
    $region38: #{bn_classifier_forward.1} parent=1 // pred_check
      _
    $region39: #{bn_classifier_forward.1} parent=1 // pred_check_branch
      %218 = sbr.rel (0) target = $region41
    $region40: #{bn_classifier_forward.1} parent=1 // pred_region
      %219 = dma.done [#allocation9], 128
    $region41: #{bn_classifier_forward.1} parent=1 // pred_fallthru
      _
    %220 = vsyncpa [#allocation3], 1
    %221 = vsyncpa [#allocation6], 1
    %222 = vsyncpa [#allocation4], 1
    %223 = vsyncpa [#allocation9], 1

</llo_original>
